<compile_context>
chip_gen: v5e
topology: v5e:2x2
jax: 0.10.0
libtpu: 0.0.40
codegen_flags: <defaults>
</compile_context>

<pallas_src>
import jax
import jax.numpy as jnp
from jax.experimental import pallas as pl
from jax.experimental.pallas import tpu as pltpu


_VMEM_LIMIT_BYTES = 48 << 20         # < v7x's 64 MiB physical, >> v5e's 16 MiB default scoped
_FUSED_SLAB_BYTES_MAX = 4 << 20      # per-batch (C, HW) slab budget for the fused path
_TWO_PASS_BLOCK_BYTES_MAX = 2 << 20  # per-array block budget for the streamed fallback


# --------------------------- fused single-pass kernel ---------------------------
def _make_fused_kernel(hw):
    inv_hw = 1.0 / float(hw)

    def kernel(x_ref, w_ref, b_ref, o_ref):
        # x_ref: (1, C, HW); w_ref: (1, Cout, Cin); b_ref: (1, Cout, 1); o_ref: (1, Cout, HW)
        x = x_ref[...]
        pooled = jnp.sum(x.astype(jnp.float32), axis=2, keepdims=True) * inv_hw   # (1, Cin, 1)
        w = w_ref[0].astype(jnp.float32)                                          # (Cout, Cin)
        logits = jnp.dot(w, pooled[0], preferred_element_type=jnp.float32)        # (Cout, 1)
        att = jax.nn.sigmoid(logits + b_ref[0].astype(jnp.float32))               # (Cout, 1)
        o_ref[...] = x * att[None, :, :].astype(x.dtype)                          # lane-broadcast

    return kernel


# --------------------------- two-pass fallback kernels ---------------------------
def _make_pool_sum_kernel(hw_total, t_hw, n_hw_inner, masked):
    def kernel(x_ref, sum_ref):
        # x_ref: (1, C, t_hw); sum_ref: (1, 1, C, 1) f32, resident across the HW axis.
        h = pl.program_id(2)

        @pl.when(h == 0)
        def _init():
            sum_ref[...] = jnp.zeros_like(sum_ref)

        x = x_ref[...].astype(jnp.float32)
        if masked:
            p = pl.program_id(1)
            start = (p * n_hw_inner + h) * t_hw
            lane = jax.lax.broadcasted_iota(jnp.int32, x.shape, 2) + start
            x = jnp.where(lane < hw_total, x, 0.0)
        s = jnp.sum(x, axis=2, keepdims=True)      # (1, C, 1)
        sum_ref[...] += s[:, None]                 # (1, 1, C, 1)

    return kernel


def _apply_kernel(att_ref, x_ref, o_ref):
    # att_ref: (1, C, 1) in x dtype; x_ref / o_ref: (1, C, t_hw).
    o_ref[...] = x_ref[...] * att_ref[...]


def _pick_hw_tile(hw, c, itemsize, max_block_bytes):
    """Largest HW tile (multiple of 128) whose (C, tile) block fits the budget.

    Prefers exact divisors of hw (no ragged tail); otherwise returns the largest
    multiple-of-128 tile within budget and the caller uses cdiv + masking.
    """
    lane_budget = max(128, (max_block_bytes // max(1, c * itemsize)) // 128 * 128)
    hw_padded = -(-hw // 128) * 128
    max_lanes = min(lane_budget, hw_padded)
    t = max_lanes
    while t >= 128:
        if hw % t == 0:
            return t
        t -= 128
    return max_lanes


# ------------------------------------ wrapper ------------------------------------
def attention_refinement_module(x_nchw, weight, bias, *,
                                force_two_pass=False,
                                two_pass_block_bytes=_TWO_PASS_BLOCK_BYTES_MAX):
    """x_nchw: (N, C, H, W); weight: Conv2d 1x1 weight (Cout, Cin) or (Cout, Cin, 1, 1);
    bias: (Cout,)."""
    if weight.ndim == 4:   # accept PyTorch's (Cout, Cin, 1, 1) layout directly
        weight = weight.reshape(weight.shape[0], weight.shape[1])

    N, C, H, W = x_nchw.shape
    Cout, Cin = weight.shape
    assert Cin == C, "in_channels must match input channel dim"
    assert Cout == Cin, "broadcast multiply requires out_channels == in_channels"
    HW = H * W
    dtype = x_nchw.dtype
    itemsize = jnp.dtype(dtype).itemsize

    # Free reshape: NCHW is already (N, C, HW)-contiguous.  No transposes.
    x3 = x_nchw.reshape(N, C, HW)

    slab_bytes = C * HW * itemsize
    if (not force_two_pass) and slab_bytes <= _FUSED_SLAB_BYTES_MAX:
        # ---- fused single-pass: 1 HBM read + 1 HBM write of the feature map ----
        w3 = weight.reshape(1, Cout, Cin)
        b3 = bias.reshape(1, Cout, 1)
        out3 = pl.pallas_call(
            _make_fused_kernel(HW),
            out_shape=jax.ShapeDtypeStruct((N, Cout, HW), dtype),
            grid_spec=pltpu.PrefetchScalarGridSpec(
                num_scalar_prefetch=0,
                grid=(N,),
                in_specs=[
                    pl.BlockSpec((1, C, HW), lambda n: (n, 0, 0)),
                    pl.BlockSpec((1, Cout, Cin), lambda n: (0, 0, 0)),
                    pl.BlockSpec((1, Cout, 1), lambda n: (0, 0, 0)),
                ],
                out_specs=pl.BlockSpec((1, Cout, HW), lambda n: (n, 0, 0)),
            ),
            compiler_params=pltpu.CompilerParams(
                dimension_semantics=("parallel",),
                vmem_limit_bytes=_VMEM_LIMIT_BYTES),
        )(x3, w3, b3)
        return out3.reshape(N, Cout, H, W)

    # ---- streamed two-pass fallback (per-batch slab too big for VMEM) ----
    t_hw = _pick_hw_tile(HW, C, itemsize, two_pass_block_bytes)
    n_hw = -(-HW // t_hw)
    masked = (HW % t_hw) != 0
    # v7x: with N == 1 the batch axis cannot shard across the two TensorCores,
    # so split the HW reduction into two parallel partial sums.
    n_par = 2 if (N == 1 and n_hw % 2 == 0 and n_hw >= 2) else 1
    n_hw_inner = n_hw // n_par

    # Pass 1: streamed spatial sum (f32 accumulation) -> (N, n_par, C, 1)
    pool_sum = pl.pallas_call(
        _make_pool_sum_kernel(HW, t_hw, n_hw_inner, masked),
        out_shape=jax.ShapeDtypeStruct((N, n_par, C, 1), jnp.float32),
        grid_spec=pltpu.PrefetchScalarGridSpec(
            num_scalar_prefetch=0,
            grid=(N, n_par, n_hw_inner),
            in_specs=[pl.BlockSpec((1, C, t_hw),
                                   lambda n, p, h: (n, 0, p * n_hw_inner + h))],
            out_specs=pl.BlockSpec((1, 1, C, 1), lambda n, p, h: (n, p, 0, 0)),
        ),
        compiler_params=pltpu.CompilerParams(
            dimension_semantics=("parallel", "parallel", "arbitrary"),
            vmem_limit_bytes=_VMEM_LIMIT_BYTES),
    )(x3)

    # Tiny 1x1 conv + sigmoid on the pooled vector (plain JAX; N*C elements).
    pooled = jnp.sum(pool_sum, axis=1)[:, :, 0] * (1.0 / HW)                # (N, C) f32
    att = jax.nn.sigmoid(
        jnp.dot(pooled, weight.astype(jnp.float32).T,
                preferred_element_type=jnp.float32)
        + bias.astype(jnp.float32)[None, :])                               # (N, Cout) f32
    att3 = att.astype(dtype).reshape(N, Cout, 1)

    # Pass 2: streamed broadcast-multiply, fully parallel grid.
    out3 = pl.pallas_call(
        _apply_kernel,
        out_shape=jax.ShapeDtypeStruct((N, Cout, HW), dtype),
        grid_spec=pltpu.PrefetchScalarGridSpec(
            num_scalar_prefetch=0,
            grid=(N, n_hw),
            in_specs=[
                pl.BlockSpec((1, Cout, 1), lambda n, h: (n, 0, 0)),
                pl.BlockSpec((1, C, t_hw), lambda n, h: (n, 0, h)),
            ],
            out_specs=pl.BlockSpec((1, Cout, t_hw), lambda n, h: (n, 0, h)),
        ),
        compiler_params=pltpu.CompilerParams(
            dimension_semantics=("parallel", "parallel"),
            vmem_limit_bytes=_VMEM_LIMIT_BYTES),
    )(att3, x3)

    return out3.reshape(N, Cout, H, W)


def _reference(x_nchw, weight, bias):
    pooled = jnp.mean(x_nchw, axis=(2, 3), keepdims=True)                  # (N, C, 1, 1)
    att = jnp.einsum('nchw,oc->nohw', pooled, weight) + bias[None, :, None, None]
    att = jax.nn.sigmoid(att)
    return x_nchw * att


if __name__ == "__main__":
    key = jax.random.PRNGKey(0)
    k_x, k_w, k_b = jax.random.split(key, 3)

    N, C, H, W = 2, 8, 16, 16            # in_channels == out_channels == 8
    x = jax.random.normal(k_x, (N, C, H, W), dtype=jnp.float32)
    weight = jax.random.normal(k_w, (C, C), dtype=jnp.float32) * 0.1       # Conv2d 1x1 (out, in)
    bias = jax.random.normal(k_b, (C,), dtype=jnp.float32) * 0.1

    # 1) fused single-pass path (primary).
    out = attention_refinement_module(x, weight, bias)
    out = jax.block_until_ready(out)
    ref = _reference(x, weight, bias)
    assert out.shape == (N, C, H, W)
    assert jnp.allclose(out, ref, atol=1e-5, rtol=1e-5), "fused path mismatch"

    # 2) streamed two-pass fallback: exact 128-lane tiling + the N==1 partial-sum
    #    split used for v7x's two TensorCores.
    x1 = x[:1]
    out1 = attention_refinement_module(x1, weight, bias, force_two_pass=True,
                                       two_pass_block_bytes=C * 128 * 4)
    out1 = jax.block_until_ready(out1)
    assert jnp.allclose(out1, _reference(x1, weight, bias), atol=1e-5, rtol=1e-5), \
        "two-pass (split) mismatch"

    # 3) streamed two-pass fallback: ragged HW (no multiple-of-128 divisor -> masked tail).
    Hr, Wr = 12, 12                      # HW = 144
    xr = jax.random.normal(k_x, (N, C, Hr, Wr), dtype=jnp.float32)
    outr = attention_refinement_module(xr, weight, bias, force_two_pass=True,
                                       two_pass_block_bytes=C * 128 * 4)
    outr = jax.block_until_ready(outr)
    assert jnp.allclose(outr, _reference(xr, weight, bias), atol=1e-5, rtol=1e-5), \
        "two-pass (ragged) mismatch"

    # TODO(synk): the module defines BatchNorm2d (self.bn) but never applies it in
    # forward(), so it is intentionally omitted here.
    print("KERNEL_OK")
</pallas_src>

<mosaic_0001>
module attributes {stable_mosaic.version = 11 : i64} {
  func.func @kernel(%arg0: i32, %arg1: memref<1x8x256xf32, #tpu.memory_space<vmem>>, %arg2: memref<1x8x8xf32, #tpu.memory_space<vmem>>, %arg3: memref<1x8x1xf32, #tpu.memory_space<vmem>>, %arg4: memref<1x8x256xf32, #tpu.memory_space<vmem>>) attributes {dimension_semantics = [#tpu.dimension_semantics<parallel>], iteration_bounds = array<i64: 2>, scalar_prefetch = 0 : i64, scratch_operands = 0 : i64, tpu.core_type = #tpu.core_type<tc>, window_params = [{transform_indices = @transform_0, window_bounds = array<i64: 1, 8, 256>}, {pipeline_mode = #tpu.pipeline_mode<synchronous>, transform_indices = @transform_1, window_bounds = array<i64: 1, 8, 8>}, {pipeline_mode = #tpu.pipeline_mode<synchronous>, transform_indices = @transform_2, window_bounds = array<i64: 1, 8, 1>}, {transform_indices = @transform_3, window_bounds = array<i64: 1, 8, 256>}]} {
    %c0 = arith.constant 0 : index
    %c0_0 = arith.constant 0 : index
    %c0_1 = arith.constant 0 : index
    %0 = vector.load %arg1[%c0, %c0_0, %c0_1] : memref<1x8x256xf32, #tpu.memory_space<vmem>>, vector<1x8x256xf32>
    %cst = arith.constant dense<0.000000e+00> : vector<1x8xf32>
    %1 = vector.multi_reduction <add>, %0, %cst [2] : vector<1x8x256xf32> to vector<1x8xf32>
    %2 = vector.shape_cast %1 : vector<1x8xf32> to vector<1x8x1xf32>
    %cst_2 = arith.constant 3.906250e-03 : f32
    %3 = vector.broadcast %cst_2 : f32 to vector<1x8x1xf32>
    %4 = arith.mulf %2, %3 : vector<1x8x1xf32>
    %c0_3 = arith.constant 0 : index
    %c0_4 = arith.constant 0 : index
    %c0_5 = arith.constant 0 : index
    %5 = vector.load %arg2[%c0_3, %c0_4, %c0_5] : memref<1x8x8xf32, #tpu.memory_space<vmem>>, vector<1x8x8xf32>
    %6 = vector.shape_cast %5 : vector<1x8x8xf32> to vector<8x8xf32>
    %7 = vector.shape_cast %4 : vector<1x8x1xf32> to vector<8x1xf32>
    %cst_6 = arith.constant dense<0.000000e+00> : vector<8x1xf32>
    %8 = tpu.matmul %6, %7, %cst_6 {dimension_numbers = #tpu.dot_dimension_numbers<[1], [0], [0], [1], [0, 0, 1, 1], [], []>} : vector<8x8xf32>, vector<8x1xf32>, vector<8x1xf32> -> vector<8x1xf32>
    %c0_7 = arith.constant 0 : index
    %c0_8 = arith.constant 0 : index
    %c0_9 = arith.constant 0 : index
    %9 = vector.load %arg3[%c0_7, %c0_8, %c0_9] : memref<1x8x1xf32, #tpu.memory_space<vmem>>, vector<1x8x1xf32>
    %10 = vector.shape_cast %9 : vector<1x8x1xf32> to vector<8x1xf32>
    %11 = arith.addf %8, %10 : vector<8x1xf32>
    %12 = arith.negf %11 : vector<8x1xf32>
    %13 = math.exp %12 : vector<8x1xf32>
    %cst_10 = arith.constant 1.000000e+00 : f32
    %14 = vector.broadcast %cst_10 : f32 to vector<8x1xf32>
    %15 = arith.addf %14, %13 : vector<8x1xf32>
    %16 = arith.divf %14, %15 : vector<8x1xf32>
    %17 = vector.shape_cast %16 : vector<8x1xf32> to vector<1x8x1xf32>
    %18 = vector.broadcast %17 : vector<1x8x1xf32> to vector<1x8x256xf32>
    %19 = arith.mulf %0, %18 : vector<1x8x256xf32>
    %c0_11 = arith.constant 0 : index
    %c0_12 = arith.constant 0 : index
    %c0_13 = arith.constant 0 : index
    %20 = vector.load %arg4[%c0_11, %c0_12, %c0_13] : memref<1x8x256xf32, #tpu.memory_space<vmem>>, vector<1x8x256xf32>
    tpu.vector_store %arg4[%c0_11, %c0_12, %c0_13], %19 {strides = array<i32>} : memref<1x8x256xf32, #tpu.memory_space<vmem>>, vector<1x8x256xf32>,
    return
  }
  func.func @transform_0(%arg0: i32) -> (i32, i32, i32) {
    %c0_i32 = arith.constant 0 : i32
    %c0_i32_0 = arith.constant 0 : i32
    %c0_i32_1 = arith.constant 0 : i32
    return %arg0, %c0_i32, %c0_i32_0 : i32, i32, i32
  }
  func.func @transform_1(%arg0: i32) -> (i32, i32, i32) {
    %c0_i32 = arith.constant 0 : i32
    %c0_i32_0 = arith.constant 0 : i32
    %c0_i32_1 = arith.constant 0 : i32
    %c0_i32_2 = arith.constant 0 : i32
    return %c0_i32, %c0_i32_0, %c0_i32_1 : i32, i32, i32
  }
  func.func @transform_2(%arg0: i32) -> (i32, i32, i32) {
    %c0_i32 = arith.constant 0 : i32
    %c0_i32_0 = arith.constant 0 : i32
    %c0_i32_1 = arith.constant 0 : i32
    %c0_i32_2 = arith.constant 0 : i32
    return %c0_i32, %c0_i32_0, %c0_i32_1 : i32, i32, i32
  }
  func.func @transform_3(%arg0: i32) -> (i32, i32, i32) {
    %c0_i32 = arith.constant 0 : i32
    %c0_i32_0 = arith.constant 0 : i32
    %c0_i32_1 = arith.constant 0 : i32
    return %arg0, %c0_i32, %c0_i32_0 : i32, i32, i32
  }
}

</mosaic_0001>

<llo_original>
// kernel: tpu_custom_call.1
$region0: #{tpu_custom_call.1}
  #allocation0 [shape = 'u32[]', space=smem, size = 0x4, offset = 0x4, fixed_abs, tag = 'smem constant byte address 0x4 - core index']
  #allocation1 [shape = 'u32[72,128]{1,0:T(1,128)}', space=vmem, size = 0x9000, scoped, tag = 'internal scratch']
  %s0 = inlined_call_operand.hbm [shape: f32[2,8,256], index: 0, kind: input, shape index: {}]
  %s1 = inlined_call_operand.vmem [shape: f32[1,8,8], index: 1, kind: input, shape index: {}]
  %s2 = inlined_call_operand.vmem [shape: f32[1,8,1], index: 2, kind: input, shape index: {}]
  %s3 = inlined_call_operand.hbm [shape: f32[2,8,256], index: 3, kind: output, shape index: {}]
  %s4 = sld [smem:[#allocation0]]
  $region49: #{tpu_custom_call.1} parent=0
    _
  %s6 = ssub.s32 1, %s4
  %s7 = scalar_select 0, %s6, %s4
  $region1: #{tpu_custom_call.1} parent=0
    #allocation2 [shape = 'u8[16384]{0}', space=vmem, size = 0x4000, scoped, tag = 'input window, operand 0']
    #allocation3 [shape = 's32[2]{0}', space=sflag, size = 0x8, scoped, tag = 'scoped memory for tpu_custom_call.1']
    #allocation4 [shape = 's32[2]{0}', space=sflag, size = 0x8, scoped, tag = 'scoped memory for tpu_custom_call.1']
    #allocation5 [shape = 'u8[16384]{0}', space=vmem, size = 0x4000, scoped, tag = 'output window, operand 0']
    %8 = vsyncpa [#allocation3], 0
    %s9 = scalar_lea.sflag [#allocation3], 1
    %10 = vsyncpa %s9, 0
    %11 = vsyncpa [#allocation4], 0
    %s12 = scalar_lea.sflag [#allocation4], 1
    %13 = vsyncpa %s12, 0
    loop: start=0, step=1, limit=4
    $region2: #{tpu_custom_call.1} parent=1 // loop_pre_header
      _
    $region3: #{tpu_custom_call.1} parent=1 // loop_header
      %s15 = sphi 0, %s19
      %p16 = scmp.ge.s32.totalorder %s15, 4
      %s25 = sphi 0, %s27
      %s28 = sphi 0, %s25
      %s29 = sphi 0, %s28
      %s45 = sphi 0, %s29
      %s49 = sphi 0, %s49
      %s51 = sphi 0, %s49
      %s52 = sphi 0, %s51
      %s66 = sphi 0, %s52
      %s70 = sphi 0, %s70
      %s72 = sphi 0, %s70
      %s73 = sphi 0, %s72
      %s87 = sphi 0, %s73
      %s93 = sphi 0, %s95
      %s96 = sphi 0, %s93
      %s97 = sphi 0, %s96
      %s113 = sphi 0, %s97
    $region4: #{tpu_custom_call.1} parent=1 // loop_header_branch
      %18 = sbr.rel (%p16) target = $region8
    $region5: #{tpu_custom_call.1} parent=1 // loop_body
      %s20 = ssub.s32 %s15, 1
      %s21 = ssub.s32 %s15, 2
      %s22 = sadd.s32 %s15, 1
      %s23 = ssub.s32 %s15, %s22
      %p24 = scmp.eq.s32.totalorder %s23, 0
      %s26 = sadd.s32 %s25, 1
      %s27 = scalar_select %p24, %s25, %s26
      %p30 = pneg %p24
      %p31 = scmp.eq.s32.totalorder %s15, 1
      %p32 = por %p30, %p31
      %p33 = scmp.ne.s32.totalorder %s25, %s28
      %p34 = scmp.eq.s32.totalorder %s15, 0
      %p35 = por %p33, %p34
      %p36 = scmp.ne.s32.totalorder %s25, %s28
      %p37 = scmp.eq.s32.totalorder %s20, 1
      %p38 = por %p36, %p37
      %p39 = scmp.ne.s32.totalorder %s28, %s29
      %p40 = scmp.eq.s32.totalorder %s20, 0
      %p41 = por %p39, %p40
      %p42 = scmp.ne.s32.totalorder %s28, %s29
      %p43 = scmp.eq.s32.totalorder %s21, 1
      %p44 = por %p42, %p43
      %p46 = scmp.ne.s32.totalorder %s29, %s45
      %p47 = scmp.eq.s32.totalorder %s21, 0
      %p48 = por %p46, %p47
      %s50 = sadd.s32 %s49, 1
      %p53 = scmp.eq.s32.totalorder %s15, 1
      %p54 = scmp.ne.s32.totalorder %s49, %s51
      %p55 = scmp.eq.s32.totalorder %s15, 0
      %p56 = por %p54, %p55
      %p57 = scmp.ne.s32.totalorder %s49, %s51
      %p58 = scmp.eq.s32.totalorder %s20, 1
      %p59 = por %p57, %p58
      %p60 = scmp.ne.s32.totalorder %s51, %s52
      %p61 = scmp.eq.s32.totalorder %s20, 0
      %p62 = por %p60, %p61
      %p63 = scmp.ne.s32.totalorder %s51, %s52
      %p64 = scmp.eq.s32.totalorder %s21, 1
      %p65 = por %p63, %p64
      %p67 = scmp.ne.s32.totalorder %s52, %s66
      %p68 = scmp.eq.s32.totalorder %s21, 0
      %p69 = por %p67, %p68
      %s71 = sadd.s32 %s70, 1
      %p74 = scmp.eq.s32.totalorder %s15, 1
      %p75 = scmp.ne.s32.totalorder %s70, %s72
      %p76 = scmp.eq.s32.totalorder %s15, 0
      %p77 = por %p75, %p76
      %p78 = scmp.ne.s32.totalorder %s70, %s72
      %p79 = scmp.eq.s32.totalorder %s20, 1
      %p80 = por %p78, %p79
      %p81 = scmp.ne.s32.totalorder %s72, %s73
      %p82 = scmp.eq.s32.totalorder %s20, 0
      %p83 = por %p81, %p82
      %p84 = scmp.ne.s32.totalorder %s72, %s73
      %p85 = scmp.eq.s32.totalorder %s21, 1
      %p86 = por %p84, %p85
      %p88 = scmp.ne.s32.totalorder %s73, %s87
      %p89 = scmp.eq.s32.totalorder %s21, 0
      %p90 = por %p88, %p89
      %s91 = ssub.s32 %s15, %s22
      %p92 = scmp.eq.s32.totalorder %s91, 0
      %s94 = sadd.s32 %s93, 1
      %s95 = scalar_select %p92, %s93, %s94
      %p98 = pneg %p92
      %p99 = scmp.eq.s32.totalorder %s15, 1
      %p100 = por %p98, %p99
      %p101 = scmp.ne.s32.totalorder %s93, %s96
      %p102 = scmp.eq.s32.totalorder %s15, 0
      %p103 = por %p101, %p102
      %p104 = scmp.ne.s32.totalorder %s93, %s96
      %p105 = scmp.eq.s32.totalorder %s20, 1
      %p106 = por %p104, %p105
      %p107 = scmp.ne.s32.totalorder %s96, %s97
      %p108 = scmp.eq.s32.totalorder %s20, 0
      %p109 = por %p107, %p108
      %p110 = scmp.ne.s32.totalorder %s96, %s97
      %p111 = scmp.eq.s32.totalorder %s21, 1
      %p112 = por %p110, %p111
      %p114 = scmp.ne.s32.totalorder %s97, %s113
      %p115 = scmp.eq.s32.totalorder %s21, 0
      %p116 = por %p114, %p115
      %p117 = scmp.le.s32.totalorder 1, %s15
      %p118 = scmp.lt.s32.totalorder %s15, 3
      %p119 = pnand %p117, %p118
      %p120 = pneg %p119
      // Predicated region
      $region9: #{tpu_custom_call.1} parent=5 // pred_check
        _
      $region10: #{tpu_custom_call.1} parent=5 // pred_check_branch
        %122 = sbr.rel (%p119) target = $region12
      $region11: #{tpu_custom_call.1} parent=5 // pred_region
        %s123 = ssub.s32 %s15, 1
        // Predicated region
        $region13: #{tpu_custom_call.1} parent=11 // pred_check
          %p124 = pneg %p62
        $region14: #{tpu_custom_call.1} parent=11 // pred_check_branch
          %126 = sbr.rel (%p124) target = $region16
        $region15: #{tpu_custom_call.1} parent=11 // pred_region
          _
        $region16: #{tpu_custom_call.1} parent=11 // pred_fallthru
          _
        // Predicated region
        $region17: #{tpu_custom_call.1} parent=11 // pred_check
          %p127 = pneg %p83
        $region18: #{tpu_custom_call.1} parent=11 // pred_check_branch
          %129 = sbr.rel (%p127) target = $region20
        $region19: #{tpu_custom_call.1} parent=11 // pred_region
          _
        $region20: #{tpu_custom_call.1} parent=11 // pred_fallthru
          _
      $region12: #{tpu_custom_call.1} parent=5 // pred_fallthru
        _
      %p130 = scmp.lt.s32.totalorder %s15, 2
      // Predicated region
      $region21: #{tpu_custom_call.1} parent=5 // pred_check
        %p131 = pneg %p130
      $region22: #{tpu_custom_call.1} parent=5 // pred_check_branch
        %133 = sbr.rel (%p131) target = $region24
      $region23: #{tpu_custom_call.1} parent=5 // pred_region
        // Predicated region
        $region25: #{tpu_custom_call.1} parent=23 // pred_check
          %p134 = pneg %p35
        $region26: #{tpu_custom_call.1} parent=23 // pred_check_branch
          %136 = sbr.rel (%p134) target = $region28
        $region27: #{tpu_custom_call.1} parent=23 // pred_region
          %s137 = sand.u32 %s25, 1
          %s138 = scalar_lea.sflag [#allocation3], %s137
          %s139 = sand.u32 %s25, 1
          %s140 = smul.addr %s139, 16
          %s141 = scalar_lea.vmem [#allocation2], %s140
          %143 = vsyncadd %s138, 0
          %s144 = smul.addr %s15, 2
          %s145 = smul.addr %s144, 8
          %s146 = scalar_lea.hbm %s0, %s145
          %s148 = sshll.u32 %s146, 4
          %s149 = int_to_ptr.hbm [resolvable:$true] %s148
          %s150 = sshll.u32 %s141, 4
          %s151 = int_to_ptr.vmem [resolvable:$true] %s150
          %153 = dma.hbm_to_vmem [thread:$0]  %s149, 256, %s151, %s138
        $region28: #{tpu_custom_call.1} parent=23 // pred_fallthru
          _
      $region24: #{tpu_custom_call.1} parent=5 // pred_fallthru
        _
      %p154 = scmp.le.s32.totalorder 1, %s15
      %p155 = scmp.lt.s32.totalorder %s15, 3
      %p156 = pnand %p154, %p155
      %p157 = pneg %p156
      // Predicated region
      $region29: #{tpu_custom_call.1} parent=5 // pred_check
        _
      $region30: #{tpu_custom_call.1} parent=5 // pred_check_branch
        %159 = sbr.rel (%p156) target = $region32
      $region31: #{tpu_custom_call.1} parent=5 // pred_region
        %s160 = ssub.s32 %s15, 1
        %s161 = sand.u32 %s28, 1
        %s162 = scalar_lea.sflag [#allocation3], %s161
        %s163 = sand.u32 %s28, 1
        %s164 = smul.addr %s163, 16
        %s165 = scalar_lea.vmem [#allocation2], %s164
        // Predicated region
        $region33: #{tpu_custom_call.1} parent=31 // pred_check
          %p166 = pneg %p41
        $region34: #{tpu_custom_call.1} parent=31 // pred_check_branch
          %168 = sbr.rel (%p166) target = $region36
        $region35: #{tpu_custom_call.1} parent=31 // pred_region
          %170 = dma.done %s162, 256
        $region36: #{tpu_custom_call.1} parent=31 // pred_fallthru
          _
        %s171 = sand.u32 %s28, 1
        %s172 = scalar_lea.sflag [#allocation3], %s171
        %s173 = sand.u32 %s28, 1
        %s174 = smul.addr %s173, 16
        %s175 = scalar_lea.vmem [#allocation2], %s174
        %p176 = pneg %p41
        %p177 = pneg %p38
        %p178 = pneg %p62
        %p179 = pneg %p59
        %p180 = pneg %p83
        %p181 = pneg %p80
        %p182 = pneg %p109
        %p183 = pneg %p106
        %s184 = sand.u32 %s96, 1
        %s185 = scalar_lea.sflag [#allocation4], %s184
        %s186 = sand.u32 %s96, 1
        %s187 = smul.addr %s186, 16
        %s188 = scalar_lea.vmem [#allocation5], %s187
        %v189 = vld [vmem:[%s165] sm:$0xff]
        %v190 = vld [vmem:[%s165 + $0x8] sm:$0xff]
        %v191 = vadd.f32 %v189, %v190
        %192 = vadd.xlane.f32.xlu0 %v191
        %v193 = vpop.xlane.xlu0 %192
        %v194 = vmul.f32 %v193, 0.00390625
        %v195 = vld [vmem:[%s1] sm:$0xff]
        %v196 = vld [vmem:[%s2] sm:$0xff]
        %vm197 = vcmask 64512
        %v199 = vsel %vm197, %v195, 0
        %201 = vmatpush.msra.mxu0 0.0
        %202 = vmatpush.msra.mxu0 0.0
        %203 = vmatpush.msra.mxu0 0.0
        %204 = vmatpush.msra.mxu0 0.0
        %205 = vmatpush.msra.mxu0 0.0
        %206 = vmatpush.msra.mxu0 0.0
        %207 = vmatpush.msra.mxu0 0.0
        %208 = vmatpush.msra.mxu0 0.0
        %209 = vmatpush.msra.mxu0 0.0
        %210 = vmatpush.msra.mxu0 0.0
        %211 = vmatpush.msra.mxu0 0.0
        %212 = vmatpush.msra.mxu0 0.0
        %213 = vmatpush.msra.mxu0 0.0
        %214 = vmatpush.msra.mxu0 0.0
        %215 = vmatpush.msra.mxu0 0.0
        %216 = vmatpush.msra.mxu0 %v194
        %217 = vmatmul.f32.gmra.mxu0 %v199
        %v218 = vpop.f32.mrf.mxu0
        %v219 = vadd.f32 %v196, %v218
        %220 = vdwg.mxu0
        %v221 = vxor.u32 %v219, 2147483648
        %v222 = vmul.f32 %v221, 1.442695
        %v223 = vpow.pop %v222
        %v224 = vadd.f32 %v223, 1.0
        %v225 = vrcp.pop %v224
        %v226 = vmul.f32 %v224, %v225
        %v227 = vsub.f32 1.0, %v226
        %v228 = vmul.f32 %v225, %v227
        %v229 = vadd.f32 %v225, %v228
        %vm230 = vweird.f32 %v224
        %vm231 = vweird.f32 %v225
        %vm232 = vmor %vm230, %vm231
        %v233 = vsel %vm232, %v225, %v229
        %v234 = vand.u32 2147483647, %v224
        %vm235 = vcmp.eq.f32.partialorder %v234, 8.507059e+37
        %v236 = vand.u32 %v224, 2147483648
        %v237 = vor.u32 1.1754944e-38, %v236
        %v238 = vsel %vm235, %v237, %v233
        %v239 = vmul.f32 1.0, %v238
        %241 = vset.pattern.permute.xlu0 0
        %242 = vperm.xlu0 %241, %v239
        %v243 = vpop.permute.xlu0 %242
        %v245 = vmul.f32 %v189, %v243
        %v246 = vmul.f32 %v190, %v243
        %247 = vst [vmem:[%s188] sm:$0xff] %v245
        %248 = vst [vmem:[%s188 + $0x8] sm:$0xff] %v246
        %s249 = sand.u32 %s96, 1
        %s250 = scalar_lea.sflag [#allocation4], %s249
        %s251 = sand.u32 %s96, 1
        %s252 = smul.addr %s251, 16
        %s253 = scalar_lea.vmem [#allocation5], %s252
        // Predicated region
        $region37: #{tpu_custom_call.1} parent=31 // pred_check
          %p254 = pneg %p106
        $region38: #{tpu_custom_call.1} parent=31 // pred_check_branch
          %256 = sbr.rel (%p254) target = $region40
        $region39: #{tpu_custom_call.1} parent=31 // pred_region
          %258 = vsyncadd %s250, 0
          %s259 = smul.addr %s20, 2
          %s260 = smul.addr %s259, 8
          %s261 = scalar_lea.hbm %s3, %s260
          %s263 = sshll.u32 %s253, 4
          %s264 = int_to_ptr.vmem [resolvable:$true] %s263
          %s265 = sshll.u32 %s261, 4
          %s266 = int_to_ptr.hbm [resolvable:$true] %s265
          %268 = dma.vmem_to_hbm [thread:$0]  %s264, 256, %s266, %s250
        $region40: #{tpu_custom_call.1} parent=31 // pred_fallthru
          _
      $region32: #{tpu_custom_call.1} parent=5 // pred_fallthru
        _
      %p269 = scmp.le.s32.totalorder 2, %s15
      // Predicated region
      $region41: #{tpu_custom_call.1} parent=5 // pred_check
        %p270 = pneg %p269
      $region42: #{tpu_custom_call.1} parent=5 // pred_check_branch
        %272 = sbr.rel (%p270) target = $region44
      $region43: #{tpu_custom_call.1} parent=5 // pred_region
        %s273 = ssub.s32 %s15, 2
        // Predicated region
        $region45: #{tpu_custom_call.1} parent=43 // pred_check
          %p274 = pneg %p112
        $region46: #{tpu_custom_call.1} parent=43 // pred_check_branch
          %276 = sbr.rel (%p274) target = $region48
        $region47: #{tpu_custom_call.1} parent=43 // pred_region
          %s277 = sand.u32 %s97, 1
          %s278 = scalar_lea.sflag [#allocation4], %s277
          %s279 = sand.u32 %s97, 1
          %s280 = smul.addr %s279, 16
          %s281 = scalar_lea.vmem [#allocation5], %s280
          %283 = dma.done %s278, 256
        $region48: #{tpu_custom_call.1} parent=43 // pred_fallthru
          _
      $region44: #{tpu_custom_call.1} parent=5 // pred_fallthru
        _
    $region6: #{tpu_custom_call.1} parent=1 // loop_footer
      %s19 = sadd.s32 1, %s15
    $region7: #{tpu_custom_call.1} parent=1 // loop_footer_branch
      %14 = sbr.rel target = $region3
    $region8: #{tpu_custom_call.1} parent=1 // loop_exit
      _
    %284 = vsyncpa [#allocation3], 1
    %s285 = scalar_lea.sflag [#allocation3], 1
    %286 = vsyncpa %s285, 1
    %287 = vsyncpa [#allocation4], 1
    %s288 = scalar_lea.sflag [#allocation4], 1
    %289 = vsyncpa %s288, 1

</llo_original>
